<compile_context>
chip_gen: v7x
topology: tpu7x:2x2x1
jax: 0.10.0
libtpu: 0.0.40
codegen_flags: <defaults>
</compile_context>

<pallas_src>
import jax
import jax.numpy as jnp
from jax.experimental import pallas as pl
from jax.experimental.pallas import tpu as pltpu

SUBLANE = 8


def _round_up(x, m):
    return ((x + m - 1) // m) * m


def _make_fused_mlp_kernel(num_layers):
    """Build a kernel with signature (x_ref, w0, b0, ..., w_{L-1}, b_{L-1}, o_ref)."""

    def kernel(x_ref, *refs):
        o_ref = refs[-1]
        # Activation lives in vregs/VMEM for the whole stack; cast to bf16
        # once here (inside the kernel -> no extra wrapper HBM pass).
        h = x_ref[...].astype(jnp.bfloat16)
        # Small, static L -> Python-unrolled.  (Heterogeneous per-layer
        # shapes preclude a fori_loop over a stacked array; for deep stacks
        # switch to a packed layout + lax.fori_loop.)
        for l in range(num_layers):
            w = refs[2 * l][...]        # (fan_in_l, fan_out_l) bf16
            b = refs[2 * l + 1][...]    # (1, fan_out_l) f32
            y = jnp.dot(h, w, preferred_element_type=jnp.float32)  # MXU, f32 acc
            y = jnp.maximum(y + b, 0.0)                            # bias+ReLU in f32
            h = y.astype(jnp.bfloat16) if l + 1 < num_layers else y
        o_ref[...] = h.astype(o_ref.dtype)

    return kernel


def init_mlp_params(key, input_size, layer_neurons):
    """nn.Linear-style U(-1/sqrt(fan_in), +1/sqrt(fan_in)) init.

    Keeps exact f32 per-layer params for the reference, plus bf16 kernel
    copies stored [in, out] (transposed vs. PyTorch's [out, in]).
    """
    raw, kern_w, kern_b = [], [], []
    fan_in = input_size
    for n_out in layer_neurons:
        key, kw, kb = jax.random.split(key, 3)
        bound = 1.0 / (float(fan_in) ** 0.5)
        w = jax.random.uniform(kw, (fan_in, n_out), jnp.float32, -bound, bound)
        b = jax.random.uniform(kb, (n_out,), jnp.float32, -bound, bound)
        raw.append((w, b))
        kern_w.append(w.astype(jnp.bfloat16))         # MXU-native dtype
        kern_b.append(b.reshape(1, n_out))            # f32 epilogue
        fan_in = n_out
    return {
        "raw": raw,
        "w": kern_w,
        "b": kern_b,
        "input_size": input_size,
        "out_size": layer_neurons[-1],
    }


def mlp_forward(x, params, tm=None):
    """Fused MLP forward: one pallas_call for every Linear+ReLU layer."""
    m, k = x.shape
    assert k == params["input_size"], (k, params["input_size"])
    ws, bs = params["w"], params["b"]
    num_layers = len(ws)
    out_size = params["out_size"]

    # Batch tile: sublane-aligned; large tiles for large batches (fewer grid
    # steps, better HBM pipelining), exact single tile for small batches.
    if tm is None:
        if m >= 1024:
            tm = 512           # v6e sweet spot; even extents feed both v7x TCs
        elif m >= 512:
            tm = 256
        else:
            tm = _round_up(m, SUBLANE)
    m_pad = _round_up(m, tm)
    xp = x if m_pad == m else jnp.pad(x, ((0, m_pad - m), (0, 0)))

    # Explicit VMEM budget: single-copy resident weights/biases +
    # double-buffered x/out tiles + f32/bf16 intermediates, 50% headroom.
    weight_bytes = sum(w.size * w.dtype.itemsize for w in ws)
    bias_bytes = sum(b.size * b.dtype.itemsize for b in bs)
    max_width = max([k, out_size] + [w.shape[1] for w in ws])
    tile_bytes = 2 * tm * k * xp.dtype.itemsize + 2 * tm * out_size * 4
    act_bytes = 2 * tm * max_width * 4
    vmem_needed = weight_bytes + bias_bytes + tile_bytes + act_bytes
    vmem_limit = int(min(100 << 20, max(16 << 20, int(1.5 * vmem_needed))))

    flops = 2 * m_pad * sum(w.shape[0] * w.shape[1] for w in ws)
    bytes_accessed = (xp.size * xp.dtype.itemsize + weight_bytes + bias_bytes
                      + m_pad * out_size * 4)

    # Grid-invariant operands: whole-array, single-buffer VMEM residents.
    resident = pl.BlockSpec(memory_space=pltpu.MemorySpace.VMEM)
    wb_specs = [resident] * (2 * num_layers)

    kernel = _make_fused_mlp_kernel(num_layers)
    out = pl.pallas_call(
        kernel,
        out_shape=jax.ShapeDtypeStruct((m_pad, out_size), x.dtype),
        grid=(m_pad // tm,),
        in_specs=[pl.BlockSpec((tm, k), lambda i: (i, 0))] + wb_specs,
        out_specs=pl.BlockSpec((tm, out_size), lambda i: (i, 0)),
        compiler_params=pltpu.CompilerParams(
            dimension_semantics=("parallel",),
            vmem_limit_bytes=vmem_limit,
        ),
        cost_estimate=pl.CostEstimate(
            flops=flops, transcendentals=0, bytes_accessed=bytes_accessed),
    )(xp, *[t for pair in zip(ws, bs) for t in pair])

    return out if m_pad == m else out[:m]


def mlp_reference(x, params):
    h = x
    for w, b in params["raw"]:
        h = jnp.maximum(h @ w + b, 0.0)     # ReLU after every Linear (incl. last)
    return h


if __name__ == "__main__":
    key = jax.random.PRNGKey(0)
    batch = 8
    input_size = 32
    layer_neurons = [64, 48, 16]

    kx, kp = jax.random.split(key)
    x = jax.random.normal(kx, (batch, input_size), jnp.float32)
    params = init_mlp_params(kp, input_size, layer_neurons)

    fwd = jax.jit(lambda xx: mlp_forward(xx, params))
    out = fwd(x)
    jax.block_until_ready(out)

    ref = mlp_reference(x, params)
    assert out.shape == (batch, layer_neurons[-1]), out.shape
    # bf16 weights/activations with f32 accumulation vs. an all-f32 reference
    # -> loosened tolerance (inputs rounded to bf16; accumulation stays f32).
    assert jnp.allclose(out, ref, atol=2e-2, rtol=2e-2), "mismatch vs reference"

    print("KERNEL_OK")
</pallas_src>

<mosaic_0001>
module attributes {stable_mosaic.version = 11 : i64} {
  func.func @kernel(%arg0: i32, %arg1: memref<8x32xf32, #tpu.memory_space<vmem>>, %arg2: memref<32x64xbf16, #tpu.memory_space<vmem>>, %arg3: memref<1x64xf32, #tpu.memory_space<vmem>>, %arg4: memref<64x48xbf16, #tpu.memory_space<vmem>>, %arg5: memref<1x48xf32, #tpu.memory_space<vmem>>, %arg6: memref<48x16xbf16, #tpu.memory_space<vmem>>, %arg7: memref<1x16xf32, #tpu.memory_space<vmem>>, %arg8: memref<8x16xf32, #tpu.memory_space<vmem>>) attributes {dimension_semantics = [#tpu.dimension_semantics<parallel>], iteration_bounds = array<i64: 1>, scalar_prefetch = 0 : i64, scratch_operands = 0 : i64, tpu.core_type = #tpu.core_type<tc>, window_params = [{transform_indices = @transform_0, window_bounds = array<i64: 8, 32>}, {pipeline_mode = #tpu.pipeline_mode<synchronous>, transform_indices = @transform_1, window_bounds = array<i64: 32, 64>}, {pipeline_mode = #tpu.pipeline_mode<synchronous>, transform_indices = @transform_2, window_bounds = array<i64: 1, 64>}, {pipeline_mode = #tpu.pipeline_mode<synchronous>, transform_indices = @transform_3, window_bounds = array<i64: 64, 48>}, {pipeline_mode = #tpu.pipeline_mode<synchronous>, transform_indices = @transform_4, window_bounds = array<i64: 1, 48>}, {pipeline_mode = #tpu.pipeline_mode<synchronous>, transform_indices = @transform_5, window_bounds = array<i64: 48, 16>}, {pipeline_mode = #tpu.pipeline_mode<synchronous>, transform_indices = @transform_6, window_bounds = array<i64: 1, 16>}, {transform_indices = @transform_7, window_bounds = array<i64: 8, 16>}]} {
    %c0 = arith.constant 0 : index
    %c0_0 = arith.constant 0 : index
    %0 = vector.load %arg1[%c0, %c0_0] : memref<8x32xf32, #tpu.memory_space<vmem>>, vector<8x32xf32>
    %1 = arith.truncf %0 : vector<8x32xf32> to vector<8x32xbf16>
    %c0_1 = arith.constant 0 : index
    %c0_2 = arith.constant 0 : index
    %2 = vector.load %arg2[%c0_1, %c0_2] : memref<32x64xbf16, #tpu.memory_space<vmem>>, vector<32x64xbf16>
    %c0_3 = arith.constant 0 : index
    %c0_4 = arith.constant 0 : index
    %3 = vector.load %arg3[%c0_3, %c0_4] : memref<1x64xf32, #tpu.memory_space<vmem>>, vector<1x64xf32>
    %cst = arith.constant dense<0.000000e+00> : vector<8x64xf32>
    %4 = tpu.matmul %1, %2, %cst {dimension_numbers = #tpu.dot_dimension_numbers<[1], [0], [0], [1], [0, 0, 1, 1], [], []>} : vector<8x32xbf16>, vector<32x64xbf16>, vector<8x64xf32> -> vector<8x64xf32>
    %5 = vector.broadcast %3 : vector<1x64xf32> to vector<8x64xf32>
    %6 = arith.addf %4, %5 : vector<8x64xf32>
    %cst_5 = arith.constant 0.000000e+00 : f32
    %7 = vector.broadcast %cst_5 : f32 to vector<8x64xf32>
    %8 = arith.maximumf %6, %7 : vector<8x64xf32>
    %9 = arith.truncf %8 : vector<8x64xf32> to vector<8x64xbf16>
    %c0_6 = arith.constant 0 : index
    %c0_7 = arith.constant 0 : index
    %10 = vector.load %arg4[%c0_6, %c0_7] : memref<64x48xbf16, #tpu.memory_space<vmem>>, vector<64x48xbf16>
    %c0_8 = arith.constant 0 : index
    %c0_9 = arith.constant 0 : index
    %11 = vector.load %arg5[%c0_8, %c0_9] : memref<1x48xf32, #tpu.memory_space<vmem>>, vector<1x48xf32>
    %cst_10 = arith.constant dense<0.000000e+00> : vector<8x48xf32>
    %12 = tpu.matmul %9, %10, %cst_10 {dimension_numbers = #tpu.dot_dimension_numbers<[1], [0], [0], [1], [0, 0, 1, 1], [], []>} : vector<8x64xbf16>, vector<64x48xbf16>, vector<8x48xf32> -> vector<8x48xf32>
    %13 = vector.broadcast %11 : vector<1x48xf32> to vector<8x48xf32>
    %14 = arith.addf %12, %13 : vector<8x48xf32>
    %cst_11 = arith.constant 0.000000e+00 : f32
    %15 = vector.broadcast %cst_11 : f32 to vector<8x48xf32>
    %16 = arith.maximumf %14, %15 : vector<8x48xf32>
    %17 = arith.truncf %16 : vector<8x48xf32> to vector<8x48xbf16>
    %c0_12 = arith.constant 0 : index
    %c0_13 = arith.constant 0 : index
    %18 = vector.load %arg6[%c0_12, %c0_13] : memref<48x16xbf16, #tpu.memory_space<vmem>>, vector<48x16xbf16>
    %c0_14 = arith.constant 0 : index
    %c0_15 = arith.constant 0 : index
    %19 = vector.load %arg7[%c0_14, %c0_15] : memref<1x16xf32, #tpu.memory_space<vmem>>, vector<1x16xf32>
    %cst_16 = arith.constant dense<0.000000e+00> : vector<8x16xf32>
    %20 = tpu.matmul %17, %18, %cst_16 {dimension_numbers = #tpu.dot_dimension_numbers<[1], [0], [0], [1], [0, 0, 1, 1], [], []>} : vector<8x48xbf16>, vector<48x16xbf16>, vector<8x16xf32> -> vector<8x16xf32>
    %21 = vector.broadcast %19 : vector<1x16xf32> to vector<8x16xf32>
    %22 = arith.addf %20, %21 : vector<8x16xf32>
    %cst_17 = arith.constant 0.000000e+00 : f32
    %23 = vector.broadcast %cst_17 : f32 to vector<8x16xf32>
    %24 = arith.maximumf %22, %23 : vector<8x16xf32>
    %c0_18 = arith.constant 0 : index
    %c0_19 = arith.constant 0 : index
    %25 = vector.load %arg8[%c0_18, %c0_19] : memref<8x16xf32, #tpu.memory_space<vmem>>, vector<8x16xf32>
    tpu.vector_store %arg8[%c0_18, %c0_19], %24 {strides = array<i32>} : memref<8x16xf32, #tpu.memory_space<vmem>>, vector<8x16xf32>,
    return
  }
  func.func @transform_0(%arg0: i32) -> (i32, i32) {
    %c0_i32 = arith.constant 0 : i32
    %c0_i32_0 = arith.constant 0 : i32
    return %arg0, %c0_i32 : i32, i32
  }
  func.func @transform_1(%arg0: i32) -> (i32, i32) {
    %c0_i32 = arith.constant 0 : i32
    %c0_i32_0 = arith.constant 0 : i32
    %c0_i32_1 = arith.constant 0 : i32
    return %c0_i32, %c0_i32_0 : i32, i32
  }
  func.func @transform_2(%arg0: i32) -> (i32, i32) {
    %c0_i32 = arith.constant 0 : i32
    %c0_i32_0 = arith.constant 0 : i32
    %c0_i32_1 = arith.constant 0 : i32
    return %c0_i32, %c0_i32_0 : i32, i32
  }
  func.func @transform_3(%arg0: i32) -> (i32, i32) {
    %c0_i32 = arith.constant 0 : i32
    %c0_i32_0 = arith.constant 0 : i32
    %c0_i32_1 = arith.constant 0 : i32
    return %c0_i32, %c0_i32_0 : i32, i32
  }
  func.func @transform_4(%arg0: i32) -> (i32, i32) {
    %c0_i32 = arith.constant 0 : i32
    %c0_i32_0 = arith.constant 0 : i32
    %c0_i32_1 = arith.constant 0 : i32
    return %c0_i32, %c0_i32_0 : i32, i32
  }
  func.func @transform_5(%arg0: i32) -> (i32, i32) {
    %c0_i32 = arith.constant 0 : i32
    %c0_i32_0 = arith.constant 0 : i32
    %c0_i32_1 = arith.constant 0 : i32
    return %c0_i32, %c0_i32_0 : i32, i32
  }
  func.func @transform_6(%arg0: i32) -> (i32, i32) {
    %c0_i32 = arith.constant 0 : i32
    %c0_i32_0 = arith.constant 0 : i32
    %c0_i32_1 = arith.constant 0 : i32
    return %c0_i32, %c0_i32_0 : i32, i32
  }
  func.func @transform_7(%arg0: i32) -> (i32, i32) {
    %c0_i32 = arith.constant 0 : i32
    %c0_i32_0 = arith.constant 0 : i32
    return %arg0, %c0_i32 : i32, i32
  }
}

</mosaic_0001>

<llo_original>
// kernel: _lambda_.1
$region0: #{_lambda_.1}
  #allocation0 [shape = 'u32[]', space=smem, size = 0x4, offset = 0x4, fixed_abs, tag = 'smem constant byte address 0x4 - core index']
  #allocation1 [shape = 'u32[144,128]{1,0:T(1,128)}', space=vmem, size = 0x12000, scoped, tag = 'internal scratch']
  %s0 = inlined_call_operand.vmem [shape: f32[8,32], index: 0, kind: input, shape index: {}]
  %s1 = inlined_call_operand.hbm [shape: bf16[32,64], index: 1, kind: input, shape index: {}]
  %s2 = inlined_call_operand.hbm [shape: f32[1,64], index: 2, kind: input, shape index: {}]
  %s3 = inlined_call_operand.hbm [shape: bf16[64,48], index: 3, kind: input, shape index: {}]
  %s4 = inlined_call_operand.vmem [shape: f32[1,48], index: 4, kind: input, shape index: {}]
  %s5 = inlined_call_operand.vmem [shape: bf16[48,16], index: 5, kind: input, shape index: {}]
  %s6 = inlined_call_operand.vmem [shape: f32[1,16], index: 6, kind: input, shape index: {}]
  %s7 = inlined_call_operand.hbm [shape: f32[8,16], index: 7, kind: output, shape index: {}]
  %s8 = sld [smem:[#allocation0]]
  $region50: #{_lambda_.1} parent=0
    _
  %s10 = ssub.s32 1, %s8
  %s11 = scalar_select 0, %s10, %s8
  $region1: #{_lambda_.1} parent=0
    #allocation2 [shape = 'u8[8192]{0}', space=vmem, size = 0x2000, scoped, tag = 'input window, operand 1, single buffered']
    #allocation3 [shape = 's32[1]{0}', space=sflag, size = 0x4, scoped, tag = 'scoped memory for _lambda_.1']
    #allocation4 [shape = 's32[1]{0}', space=sflag, size = 0x4, scoped, tag = 'scoped memory for _lambda_.1']
    #allocation5 [shape = 'u8[512]{0}', space=vmem, size = 0x400, scoped, tag = 'input window, operand 2, single buffered']
    #allocation6 [shape = 's32[1]{0}', space=sflag, size = 0x4, scoped, tag = 'scoped memory for _lambda_.1']
    #allocation7 [shape = 'u8[16384]{0}', space=vmem, size = 0x4000, scoped, tag = 'input window, operand 3, single buffered']
    #allocation8 [shape = 'u8[4096]{0}', space=vmem, size = 0x1000, scoped, tag = 'output window, operand 0, single buffered']
    %12 = vsyncpa [#allocation3], 0
    %13 = vsyncpa [#allocation6], 0
    %14 = vsyncpa [#allocation4], 0
    // Predicated region
    $region2: #{_lambda_.1} parent=1 // pred_check
      _
    $region3: #{_lambda_.1} parent=1 // pred_check_branch
      %16 = sbr.rel (0) target = $region5
    $region4: #{_lambda_.1} parent=1 // pred_region
      _
    $region5: #{_lambda_.1} parent=1 // pred_fallthru
      _
    // Predicated region
    $region6: #{_lambda_.1} parent=1 // pred_check
      _
    $region7: #{_lambda_.1} parent=1 // pred_check_branch
      %18 = sbr.rel (0) target = $region9
    $region8: #{_lambda_.1} parent=1 // pred_region
      %s20 = ssub.s32 256, 256
      %21 = vsyncadd [#allocation3], %s20
      %s22 = sshll.u32 [#allocation2], 4
      %s23 = int_to_ptr.vmem [resolvable:$true] %s22
      %28 = dma.hbm_to_vmem [thread:$0]  %s1, 256, %s23, [#allocation3], 64, 64, 4
    $region9: #{_lambda_.1} parent=1 // pred_fallthru
      _
    // Predicated region
    $region10: #{_lambda_.1} parent=1 // pred_check
      _
    $region11: #{_lambda_.1} parent=1 // pred_check_branch
      %30 = sbr.rel (0) target = $region13
    $region12: #{_lambda_.1} parent=1 // pred_region
      %s32 = ssub.s32 16, 16
      %33 = vsyncadd [#allocation6], %s32
      %s35 = sshll.u32 [#allocation5], 4
      %s36 = int_to_ptr.vmem [resolvable:$true] %s35
      %38 = dma.hbm_to_vmem [thread:$0]  %s2, 16, %s36, [#allocation6]
    $region13: #{_lambda_.1} parent=1 // pred_fallthru
      _
    // Predicated region
    $region14: #{_lambda_.1} parent=1 // pred_check
      _
    $region15: #{_lambda_.1} parent=1 // pred_check_branch
      %40 = sbr.rel (0) target = $region17
    $region16: #{_lambda_.1} parent=1 // pred_region
      %s42 = ssub.s32 512, 512
      %43 = vsyncadd [#allocation6], %s42
      %s44 = sshll.u32 [#allocation7], 4
      %s45 = int_to_ptr.vmem [resolvable:$true] %s44
      %50 = dma.hbm_to_vmem [thread:$0]  %s3, 512, %s45, [#allocation6], 64, 64, 4
    $region17: #{_lambda_.1} parent=1 // pred_fallthru
      _
    // Predicated region
    $region18: #{_lambda_.1} parent=1 // pred_check
      _
    $region19: #{_lambda_.1} parent=1 // pred_check_branch
      %52 = sbr.rel (0) target = $region21
    $region20: #{_lambda_.1} parent=1 // pred_region
      _
    $region21: #{_lambda_.1} parent=1 // pred_fallthru
      _
    // Predicated region
    $region22: #{_lambda_.1} parent=1 // pred_check
      _
    $region23: #{_lambda_.1} parent=1 // pred_check_branch
      %54 = sbr.rel (0) target = $region25
    $region24: #{_lambda_.1} parent=1 // pred_region
      _
    $region25: #{_lambda_.1} parent=1 // pred_fallthru
      _
    // Predicated region
    $region26: #{_lambda_.1} parent=1 // pred_check
      _
    $region27: #{_lambda_.1} parent=1 // pred_check_branch
      %56 = sbr.rel (0) target = $region29
    $region28: #{_lambda_.1} parent=1 // pred_region
      _
    $region29: #{_lambda_.1} parent=1 // pred_fallthru
      _
    // Predicated region
    $region30: #{_lambda_.1} parent=1 // pred_check
      _
    $region31: #{_lambda_.1} parent=1 // pred_check_branch
      %58 = sbr.rel (0) target = $region33
    $region32: #{_lambda_.1} parent=1 // pred_region
      %59 = dma.done [#allocation3], 256
    $region33: #{_lambda_.1} parent=1 // pred_fallthru
      _
    // Predicated region
    $region34: #{_lambda_.1} parent=1 // pred_check
      _
    $region35: #{_lambda_.1} parent=1 // pred_check_branch
      %61 = sbr.rel (0) target = $region37
    $region36: #{_lambda_.1} parent=1 // pred_region
      %62 = dma.done [#allocation6], 16
    $region37: #{_lambda_.1} parent=1 // pred_fallthru
      _
    // Predicated region
    $region38: #{_lambda_.1} parent=1 // pred_check
      _
    $region39: #{_lambda_.1} parent=1 // pred_check_branch
      %64 = sbr.rel (0) target = $region41
    $region40: #{_lambda_.1} parent=1 // pred_region
      %65 = dma.done [#allocation6], 512
    $region41: #{_lambda_.1} parent=1 // pred_fallthru
      _
    %v67 = vld [vmem:[%s0] sm:$0xff]
    %v68 = vpack.c.bf16 %v67, %v67
    %v69 = vld [vmem:[#allocation2] sm:$0xf]
    %v70 = vld [vmem:[#allocation2 + $0x4] sm:$0xf]
    %v71 = vld [vmem:[#allocation2 + $0x8] sm:$0xf]
    %v72 = vld [vmem:[#allocation2 + $0xc] sm:$0xf]
    %v73 = vld [vmem:[#allocation5] sm:$0x1]
    %v75 = vlaneseq
    %v76 = vshrl.u32 %v75, 7
    %v77 = vsub.s32 0, %v76
    %v78 = vrot.slane %v73, %v77
    %v84 = vunpack.c.l.b16 %v69
    %v85 = vunpack.c.l.b16 %v70
    %v86 = vunpack.c.l.b16 %v71
    %v87 = vunpack.c.l.b16 %v72
    %v88 = vpack.c.b16 %v85, %v84
    %v89 = vpack.c.b16 %v87, %v86
    %vm92 = vcmask 261120
    %v94 = vsel %vm92, %v68, 0
    %96 = vmatprep.subr.bf16.mxu0 0
    %97 = vmatpush1.bf16.msra.mxu0 %v88
    %98 = vmatprep.subr.bf16.mxu0 0
    %99 = vmatpush1.bf16.msra.mxu0 %v89
    %100 = vmatprep.subr.bf16.mxu0 0
    %101 = vmatpush1.bf16.msra.mxu0 0
    %102 = vmatprep.subr.bf16.mxu0 0
    %103 = vmatpush1.bf16.msra.mxu0 0
    %104 = vmatprep.subr.bf16.mxu0 0
    %105 = vmatpush1.bf16.msra.mxu0 0
    %106 = vmatprep.subr.bf16.mxu0 0
    %107 = vmatpush1.bf16.msra.mxu0 0
    %108 = vmatprep.subr.bf16.mxu0 0
    %109 = vmatpush1.bf16.msra.mxu0 0
    %110 = vmatprep.subr.bf16.mxu0 0
    %111 = vmatpush1.bf16.msra.mxu0 0
    %112 = vmatprep.subr.bf16.mxu0 0
    %113 = vmatpush1.bf16.msra.mxu0 0
    %114 = vmatprep.subr.bf16.mxu0 0
    %115 = vmatpush1.bf16.msra.mxu0 0
    %116 = vmatprep.subr.bf16.mxu0 0
    %117 = vmatpush1.bf16.msra.mxu0 0
    %118 = vmatprep.subr.bf16.mxu0 0
    %119 = vmatpush1.bf16.msra.mxu0 0
    %120 = vmatprep.subr.bf16.mxu0 0
    %121 = vmatpush1.bf16.msra.mxu0 0
    %122 = vmatprep.subr.bf16.mxu0 0
    %123 = vmatpush1.bf16.msra.mxu0 0
    %124 = vmatprep.subr.bf16.mxu0 0
    %125 = vmatpush1.bf16.msra.mxu0 0
    %126 = vmatprep.subr.bf16.mxu0 0
    %127 = vmatpush1.bf16.msra.mxu0 0
    %128 = vmatprep.mubr.bf16.mxu0 0
    %129 = vmatmul.mubr.bf16.gmra.mrb[0].mxu0 %v94
    %v130 = vpop.f32.mrb[0].mxu0
    %v131 = vadd.f32 %v78, %v130
    %v132 = vpop.f32.mrb[0].mxu0
    %v133 = vpop.f32.mrb[0].mxu0
    %v134 = vpop.f32.mrb[0].mxu0
    %135 = vdwg.mxu0
    %v136 = vmax.f32 %v131, 0.0
    %v137 = vpack.c.bf16 %v136, %v136
    %v138 = vld [vmem:[#allocation7] sm:$0xf]
    %v139 = vld [vmem:[#allocation7 + $0x4] sm:$0xf]
    %v140 = vld [vmem:[#allocation7 + $0x8] sm:$0xf]
    %v141 = vld [vmem:[#allocation7 + $0xc] sm:$0xf]
    %v142 = vld [vmem:[#allocation7 + $0x10] sm:$0xf]
    %v143 = vld [vmem:[#allocation7 + $0x14] sm:$0xf]
    %v144 = vld [vmem:[#allocation7 + $0x18] sm:$0xf]
    %v145 = vld [vmem:[#allocation7 + $0x1c] sm:$0xf]
    %v146 = vld [vmem:[%s4] sm:$0x1]
    %v148 = vlaneseq
    %v149 = vshrl.u32 %v148, 7
    %v150 = vsub.s32 0, %v149
    %v151 = vrot.slane %v146, %v150
    %v161 = vunpack.c.l.b16 %v138
    %v162 = vunpack.c.l.b16 %v139
    %v163 = vunpack.c.l.b16 %v140
    %v164 = vunpack.c.l.b16 %v141
    %v165 = vunpack.c.l.b16 %v142
    %v166 = vunpack.c.l.b16 %v143
    %v167 = vunpack.c.l.b16 %v144
    %v168 = vunpack.c.l.b16 %v145
    %v169 = vpack.c.b16 %v162, %v161
    %v170 = vpack.c.b16 %v164, %v163
    %v171 = vpack.c.b16 %v166, %v165
    %v172 = vpack.c.b16 %v168, %v167
    %vm177 = vcmask 523264
    %v179 = vsel %vm177, %v137, 0
    %181 = vmatprep.subr.bf16.mxu0 0
    %182 = vmatpush1.bf16.msra.mxu0 %v169
    %183 = vmatprep.subr.bf16.mxu0 0
    %184 = vmatpush1.bf16.msra.mxu0 %v170
    %185 = vmatprep.subr.bf16.mxu0 0
    %186 = vmatpush1.bf16.msra.mxu0 %v171
    %187 = vmatprep.subr.bf16.mxu0 0
    %188 = vmatpush1.bf16.msra.mxu0 %v172
    %189 = vmatprep.subr.bf16.mxu0 0
    %190 = vmatpush1.bf16.msra.mxu0 0
    %191 = vmatprep.subr.bf16.mxu0 0
    %192 = vmatpush1.bf16.msra.mxu0 0
    %193 = vmatprep.subr.bf16.mxu0 0
    %194 = vmatpush1.bf16.msra.mxu0 0
    %195 = vmatprep.subr.bf16.mxu0 0
    %196 = vmatpush1.bf16.msra.mxu0 0
    %197 = vmatprep.subr.bf16.mxu0 0
    %198 = vmatpush1.bf16.msra.mxu0 0
    %199 = vmatprep.subr.bf16.mxu0 0
    %200 = vmatpush1.bf16.msra.mxu0 0
    %201 = vmatprep.subr.bf16.mxu0 0
    %202 = vmatpush1.bf16.msra.mxu0 0
    %203 = vmatprep.subr.bf16.mxu0 0
    %204 = vmatpush1.bf16.msra.mxu0 0
    %205 = vmatprep.subr.bf16.mxu0 0
    %206 = vmatpush1.bf16.msra.mxu0 0
    %207 = vmatprep.subr.bf16.mxu0 0
    %208 = vmatpush1.bf16.msra.mxu0 0
    %209 = vmatprep.subr.bf16.mxu0 0
    %210 = vmatpush1.bf16.msra.mxu0 0
    %211 = vmatprep.subr.bf16.mxu0 0
    %212 = vmatpush1.bf16.msra.mxu0 0
    %213 = vmatprep.mubr.bf16.mxu0 0
    %214 = vmatmul.mubr.bf16.gmra.mrb[0].mxu0 %v179
    %v215 = vpop.f32.mrb[0].mxu0
    %v216 = vadd.f32 %v151, %v215
    %v217 = vpop.f32.mrb[0].mxu0
    %v218 = vpop.f32.mrb[0].mxu0
    %v219 = vpop.f32.mrb[0].mxu0
    %220 = vdwg.mxu0
    %v221 = vmax.f32 %v216, 0.0
    %v222 = vpack.c.bf16 %v221, %v221
    %v223 = vld [vmem:[%s5] sm:$0xf]
    %v224 = vld [vmem:[%s5 + $0x4] sm:$0xf]
    %v225 = vld [vmem:[%s5 + $0x8] sm:$0xf]
    %v226 = vld [vmem:[%s5 + $0xc] sm:$0xf]
    %v227 = vld [vmem:[%s5 + $0x10] sm:$0xf]
    %v228 = vld [vmem:[%s5 + $0x14] sm:$0xf]
    %v229 = vld [vmem:[%s6] sm:$0x1]
    %v231 = vlaneseq
    %v232 = vshrl.u32 %v231, 7
    %v233 = vsub.s32 0, %v232
    %v234 = vrot.slane %v229, %v233
    %v242 = vunpack.c.l.b16 %v223
    %v243 = vunpack.c.l.b16 %v224
    %v244 = vunpack.c.l.b16 %v225
    %v245 = vunpack.c.l.b16 %v226
    %v246 = vunpack.c.l.b16 %v227
    %v247 = vunpack.c.l.b16 %v228
    %v248 = vpack.c.b16 %v243, %v242
    %v249 = vpack.c.b16 %v245, %v244
    %v250 = vpack.c.b16 %v247, %v246
    %vm254 = vcmask 392192
    %v256 = vsel %vm254, %v222, 0
    %258 = vmatprep.subr.bf16.mxu0 0
    %259 = vmatpush1.bf16.msra.mxu0 %v248
    %260 = vmatprep.subr.bf16.mxu0 0
    %261 = vmatpush1.bf16.msra.mxu0 %v249
    %262 = vmatprep.subr.bf16.mxu0 0
    %263 = vmatpush1.bf16.msra.mxu0 %v250
    %264 = vmatprep.subr.bf16.mxu0 0
    %265 = vmatpush1.bf16.msra.mxu0 0
    %266 = vmatprep.subr.bf16.mxu0 0
    %267 = vmatpush1.bf16.msra.mxu0 0
    %268 = vmatprep.subr.bf16.mxu0 0
    %269 = vmatpush1.bf16.msra.mxu0 0
    %270 = vmatprep.subr.bf16.mxu0 0
    %271 = vmatpush1.bf16.msra.mxu0 0
    %272 = vmatprep.subr.bf16.mxu0 0
    %273 = vmatpush1.bf16.msra.mxu0 0
    %274 = vmatprep.subr.bf16.mxu0 0
    %275 = vmatpush1.bf16.msra.mxu0 0
    %276 = vmatprep.subr.bf16.mxu0 0
    %277 = vmatpush1.bf16.msra.mxu0 0
    %278 = vmatprep.subr.bf16.mxu0 0
    %279 = vmatpush1.bf16.msra.mxu0 0
    %280 = vmatprep.subr.bf16.mxu0 0
    %281 = vmatpush1.bf16.msra.mxu0 0
    %282 = vmatprep.subr.bf16.mxu0 0
    %283 = vmatpush1.bf16.msra.mxu0 0
    %284 = vmatprep.subr.bf16.mxu0 0
    %285 = vmatpush1.bf16.msra.mxu0 0
    %286 = vmatprep.subr.bf16.mxu0 0
    %287 = vmatpush1.bf16.msra.mxu0 0
    %288 = vmatprep.subr.bf16.mxu0 0
    %289 = vmatpush1.bf16.msra.mxu0 0
    %290 = vmatprep.mubr.bf16.mxu0 0
    %291 = vmatmul.mubr.bf16.gmra.mrb[0].mxu0 %v256
    %v292 = vpop.f32.mrb[0].mxu0
    %v293 = vadd.f32 %v234, %v292
    %v294 = vpop.f32.mrb[0].mxu0
    %v295 = vpop.f32.mrb[0].mxu0
    %v296 = vpop.f32.mrb[0].mxu0
    %297 = vdwg.mxu0
    %v298 = vmax.f32 %v293, 0.0
    %vm299 = vcmask 130048
    %300 = vst.msk [vmem:[#allocation8] sm:$0xff] %vm299, %v298
    // Predicated region
    $region42: #{_lambda_.1} parent=1 // pred_check
      _
    $region43: #{_lambda_.1} parent=1 // pred_check_branch
      %302 = sbr.rel (0) target = $region45
    $region44: #{_lambda_.1} parent=1 // pred_region
      %s304 = ssub.s32 128, 128
      %305 = vsyncadd [#allocation4], %s304
      %s307 = sshll.u32 [#allocation8], 4
      %s308 = int_to_ptr.vmem [resolvable:$true] %s307
      %310 = dma.vmem_to_hbm [thread:$0]  %s308, 128, %s7, [#allocation4]
    $region45: #{_lambda_.1} parent=1 // pred_fallthru
      _
    // Predicated region
    $region46: #{_lambda_.1} parent=1 // pred_check
      _
    $region47: #{_lambda_.1} parent=1 // pred_check_branch
      %312 = sbr.rel (0) target = $region49
    $region48: #{_lambda_.1} parent=1 // pred_region
      %313 = dma.done [#allocation4], 128
    $region49: #{_lambda_.1} parent=1 // pred_fallthru
      _
    %314 = vsyncpa [#allocation3], 1
    %315 = vsyncpa [#allocation6], 1
    %316 = vsyncpa [#allocation4], 1

</llo_original>
